<compile_context>
chip_gen: v6e
topology: v6e:2x2x1
jax: 0.10.0
libtpu: 0.0.40
codegen_flags: <defaults>
</compile_context>

<pallas_src>
import math

import jax
import jax.numpy as jnp
from jax.experimental import pallas as pl
from jax.experimental.pallas import tpu as pltpu


def _feature_weight_kernel(alpha_ref, v3_ref, v30_ref, o3_ref, o30_ref):
    # alpha_ref: (1, W) float32, resident across all grid steps.
    # v*_ref / o*_ref: (TB, W) tiles of the two vector streams.
    al = alpha_ref[...]
    o3_ref[...] = (al * v3_ref[...].astype(jnp.float32)).astype(o3_ref.dtype)
    o30_ref[...] = (al * v30_ref[...].astype(jnp.float32)).astype(o30_ref.dtype)


def _vmem_capacity_bytes():
    try:
        return int(pltpu.get_tpu_info().vmem_capacity_bytes)
    except Exception:
        return 64 * 1024 * 1024  # conservative: v7x per-TensorCore VMEM


_SUBLANES = {1: 32, 2: 16, 4: 8, 8: 8}  # packed sublanes per 32-bit vreg row


def _choose_block_rows(total_rows, row_bytes, itemsize, tile_budget_bytes):
    """Rows per tile: multiple of the packed sublane count for the dtype,
    sized so 4 data streams (2 in + 2 out), each double-buffered, fit in the
    VMEM budget, and capped so the grid has >= 2 steps (v7x megacore) when
    there is enough work."""
    sub = _SUBLANES.get(itemsize, 8)
    tb = tile_budget_bytes // (8 * row_bytes)          # 4 streams x 2 buffers
    tb = max(sub, (tb // sub) * sub)
    if total_rows >= 2 * sub:
        half = -(-total_rows // 2)                     # ceil(R / 2)
        half = -(-half // sub) * sub                   # round up to sublanes
        tb = min(tb, half)
    if total_rows <= tb:
        return total_rows                              # single full-extent block
    return tb


def feature_weight_learner(alpha, vec_3sec, vec_30sec):
    """alpha: (F,) parameter; vec_3sec / vec_30sec: (B, F).
    Returns (alpha * vec_3sec, alpha * vec_30sec), each (B, F)."""
    B, F = vec_3sec.shape
    assert alpha.shape == (F,)
    assert vec_30sec.shape == (B, F)
    assert vec_3sec.dtype == vec_30sec.dtype
    dtype = vec_3sec.dtype
    itemsize = jnp.dtype(dtype).itemsize

    # Keep the learned weight in f32 (matches PyTorch's f32-parameter promotion).
    alpha_f32 = alpha.astype(jnp.float32)

    # --- choose a lane-dense layout with zero byte inflation ---------------
    if F % 128 == 0:
        R, W = B, F
        alpha_row = alpha_f32
        reshaped = False
    else:
        L = 128 // math.gcd(F, 128)          # rows folded into one wide row
        if B >= L and B % L == 0:
            R, W = B // L, L * F             # zero-copy row-major reshape
            alpha_row = jnp.tile(alpha_f32, L)   # tiny: (L*F,) f32
            reshaped = True
        else:
            R, W = B, F                      # full-extent-F blocks, no copies
            alpha_row = alpha_f32
            reshaped = False

    x3 = vec_3sec.reshape(R, W) if reshaped else vec_3sec
    x30 = vec_30sec.reshape(R, W) if reshaped else vec_30sec
    alpha2d = alpha_row.reshape(1, W)

    # --- tiling & VMEM budget (generation-aware) ----------------------------
    capacity = _vmem_capacity_bytes()
    tile_budget = capacity // 3
    TB = _choose_block_rows(R, W * itemsize, itemsize, tile_budget)
    grid = (pl.cdiv(R, TB),)

    buf_bytes = 8 * TB * W * itemsize + 2 * W * 4   # data tiles + resident alpha
    vmem_limit = max(32 * 1024 * 1024,
                     min(capacity * 3 // 4, buf_bytes + (16 << 20)))

    data_spec = pl.BlockSpec((TB, W), lambda i: (i, 0))

    out3, out30 = pl.pallas_call(
        _feature_weight_kernel,
        out_shape=(jax.ShapeDtypeStruct((R, W), dtype),
                   jax.ShapeDtypeStruct((R, W), dtype)),
        grid=grid,
        in_specs=[
            # alpha: constant block index -> fetched once, resident in VMEM.
            pl.BlockSpec((1, W), lambda i: (0, 0)),
            data_spec,
            data_spec,
        ],
        out_specs=[data_spec, data_spec],
        compiler_params=pltpu.CompilerParams(
            dimension_semantics=("parallel",),       # megacore on v7x
            vmem_limit_bytes=int(vmem_limit),
        ),
    )(alpha2d, x3, x30)

    if reshaped:
        out3 = out3.reshape(B, F)
        out30 = out30.reshape(B, F)
    return out3, out30


if __name__ == "__main__":
    feature_dim = 77
    batch = 4

    key = jax.random.PRNGKey(0)
    k1, k2 = jax.random.split(key)

    # Parameter init matches nn.Parameter(torch.ones(feature_dim)).
    alpha = jnp.ones((feature_dim,), dtype=jnp.float32)

    vec_3sec = jax.random.normal(k1, (batch, feature_dim), dtype=jnp.float32)
    vec_30sec = jax.random.normal(k2, (batch, feature_dim), dtype=jnp.float32)

    out_3sec, out_30sec = feature_weight_learner(alpha, vec_3sec, vec_30sec)
    jax.block_until_ready((out_3sec, out_30sec))

    # Reference check (plain JAX) for correctness of semantics.
    ref_3sec = alpha[None, :] * vec_3sec
    ref_30sec = alpha[None, :] * vec_30sec
    assert out_3sec.shape == (batch, feature_dim)
    assert out_30sec.shape == (batch, feature_dim)
    assert jnp.allclose(out_3sec, ref_3sec, atol=1e-6)
    assert jnp.allclose(out_30sec, ref_30sec, atol=1e-6)

    print("KERNEL_OK")
</pallas_src>

<mosaic_0001>
module attributes {stable_mosaic.version = 11 : i64} {
  func.func @_feature_weight_kernel(%arg0: i32, %arg1: memref<1x77xf32, #tpu.memory_space<vmem>>, %arg2: memref<4x77xf32, #tpu.memory_space<vmem>>, %arg3: memref<4x77xf32, #tpu.memory_space<vmem>>, %arg4: memref<4x77xf32, #tpu.memory_space<vmem>>, %arg5: memref<4x77xf32, #tpu.memory_space<vmem>>) attributes {dimension_semantics = [#tpu.dimension_semantics<parallel>], iteration_bounds = array<i64: 1>, scalar_prefetch = 0 : i64, scratch_operands = 0 : i64, tpu.core_type = #tpu.core_type<tc>, window_params = [{pipeline_mode = #tpu.pipeline_mode<synchronous>, transform_indices = @transform_0, window_bounds = array<i64: 1, 77>}, {transform_indices = @transform_1, window_bounds = array<i64: 4, 77>}, {transform_indices = @transform_2, window_bounds = array<i64: 4, 77>}, {transform_indices = @transform_3, window_bounds = array<i64: 4, 77>}, {transform_indices = @transform_4, window_bounds = array<i64: 4, 77>}]} {
    %c0 = arith.constant 0 : index
    %c0_0 = arith.constant 0 : index
    %0 = vector.load %arg1[%c0, %c0_0] : memref<1x77xf32, #tpu.memory_space<vmem>>, vector<1x77xf32>
    %c0_1 = arith.constant 0 : index
    %c0_2 = arith.constant 0 : index
    %1 = vector.load %arg2[%c0_1, %c0_2] : memref<4x77xf32, #tpu.memory_space<vmem>>, vector<4x77xf32>
    %2 = vector.broadcast %0 : vector<1x77xf32> to vector<4x77xf32>
    %3 = arith.mulf %2, %1 : vector<4x77xf32>
    %c0_3 = arith.constant 0 : index
    %c0_4 = arith.constant 0 : index
    %4 = vector.load %arg4[%c0_3, %c0_4] : memref<4x77xf32, #tpu.memory_space<vmem>>, vector<4x77xf32>
    tpu.vector_store %arg4[%c0_3, %c0_4], %3 {strides = array<i32>} : memref<4x77xf32, #tpu.memory_space<vmem>>, vector<4x77xf32>,
    %c0_5 = arith.constant 0 : index
    %c0_6 = arith.constant 0 : index
    %5 = vector.load %arg3[%c0_5, %c0_6] : memref<4x77xf32, #tpu.memory_space<vmem>>, vector<4x77xf32>
    %6 = vector.broadcast %0 : vector<1x77xf32> to vector<4x77xf32>
    %7 = arith.mulf %6, %5 : vector<4x77xf32>
    %c0_7 = arith.constant 0 : index
    %c0_8 = arith.constant 0 : index
    %8 = vector.load %arg5[%c0_7, %c0_8] : memref<4x77xf32, #tpu.memory_space<vmem>>, vector<4x77xf32>
    tpu.vector_store %arg5[%c0_7, %c0_8], %7 {strides = array<i32>} : memref<4x77xf32, #tpu.memory_space<vmem>>, vector<4x77xf32>,
    return
  }
  func.func @transform_0(%arg0: i32) -> (i32, i32) {
    %c0_i32 = arith.constant 0 : i32
    %c0_i32_0 = arith.constant 0 : i32
    %c0_i32_1 = arith.constant 0 : i32
    return %c0_i32, %c0_i32_0 : i32, i32
  }
  func.func @transform_1(%arg0: i32) -> (i32, i32) {
    %c0_i32 = arith.constant 0 : i32
    %c0_i32_0 = arith.constant 0 : i32
    return %arg0, %c0_i32 : i32, i32
  }
  func.func @transform_2(%arg0: i32) -> (i32, i32) {
    %c0_i32 = arith.constant 0 : i32
    %c0_i32_0 = arith.constant 0 : i32
    return %arg0, %c0_i32 : i32, i32
  }
  func.func @transform_3(%arg0: i32) -> (i32, i32) {
    %c0_i32 = arith.constant 0 : i32
    %c0_i32_0 = arith.constant 0 : i32
    return %arg0, %c0_i32 : i32, i32
  }
  func.func @transform_4(%arg0: i32) -> (i32, i32) {
    %c0_i32 = arith.constant 0 : i32
    %c0_i32_0 = arith.constant 0 : i32
    return %arg0, %c0_i32 : i32, i32
  }
}

</mosaic_0001>

<llo_original>
// kernel: tpu_custom_call.1
$region0: #{tpu_custom_call.1}
  #allocation0 [shape = 'u32[]', space=smem, size = 0x4, offset = 0x4, fixed_abs, tag = 'smem constant byte address 0x4 - core index']
  #allocation1 [shape = 'u32[144,128]{1,0:T(1,128)}', space=vmem, size = 0x12000, scoped, tag = 'internal scratch']
  %s0 = inlined_call_operand.hbm [shape: f32[1,77], index: 0, kind: input, shape index: {}]
  %s1 = inlined_call_operand.hbm [shape: f32[4,77], index: 1, kind: input, shape index: {}]
  %s2 = inlined_call_operand.hbm [shape: f32[4,77], index: 2, kind: input, shape index: {}]
  %s3 = inlined_call_operand.hbm [shape: f32[4,77], index: 3, kind: output, shape index: {0}]
  %s4 = inlined_call_operand.hbm [shape: f32[4,77], index: 4, kind: output, shape index: {1}]
  %5 = xla_tuple %s3, %s4
  %s6 = sld [smem:[#allocation0]]
  $region42: #{tpu_custom_call.1} parent=0
    _
  %s8 = ssub.s32 1, %s6
  %s9 = scalar_select 0, %s8, %s6
  $region1: #{tpu_custom_call.1} parent=0
    #allocation2 [shape = 'u8[512]{0}', space=vmem, size = 0x400, scoped, tag = 'input window, operand 0, single buffered']
    #allocation3 [shape = 's32[1]{0}', space=sflag, size = 0x4, scoped, tag = 'scoped memory for tpu_custom_call.1']
    #allocation4 [shape = 's32[1]{0}', space=sflag, size = 0x4, scoped, tag = 'scoped memory for tpu_custom_call.1']
    #allocation5 [shape = 'u8[2048]{0}', space=vmem, size = 0x800, scoped, tag = 'input window, operand 1, single buffered']
    #allocation6 [shape = 's32[1]{0}', space=sflag, size = 0x4, scoped, tag = 'scoped memory for tpu_custom_call.1']
    #allocation7 [shape = 'u8[2048]{0}', space=vmem, size = 0x800, scoped, tag = 'input window, operand 2, single buffered']
    #allocation8 [shape = 'u8[2048]{0}', space=vmem, size = 0x800, scoped, tag = 'output window, operand 0, single buffered']
    #allocation9 [shape = 'u8[2048]{0}', space=vmem, size = 0x800, scoped, tag = 'output window, operand 1, single buffered']
    #allocation10 [shape = 's32[1]{0}', space=sflag, size = 0x4, scoped, tag = 'scoped memory for tpu_custom_call.1']
    %10 = vsyncpa [#allocation3], 0
    %11 = vsyncpa [#allocation6], 0
    %12 = vsyncpa [#allocation4], 0
    %13 = vsyncpa [#allocation10], 0
    // Predicated region
    $region2: #{tpu_custom_call.1} parent=1 // pred_check
      _
    $region3: #{tpu_custom_call.1} parent=1 // pred_check_branch
      %15 = sbr.rel (0) target = $region5
    $region4: #{tpu_custom_call.1} parent=1 // pred_region
      %s17 = ssub.s32 16, 16
      %18 = vsyncadd [#allocation3], %s17
      %s20 = sshll.u32 [#allocation2], 4
      %s21 = int_to_ptr.vmem [resolvable:$true] %s20
      %23 = dma.hbm_to_vmem [thread:$0]  %s0, 16, %s21, [#allocation3]
    $region5: #{tpu_custom_call.1} parent=1 // pred_fallthru
      _
    // Predicated region
    $region6: #{tpu_custom_call.1} parent=1 // pred_check
      _
    $region7: #{tpu_custom_call.1} parent=1 // pred_check_branch
      %25 = sbr.rel (0) target = $region9
    $region8: #{tpu_custom_call.1} parent=1 // pred_region
      %s27 = ssub.s32 64, 64
      %28 = vsyncadd [#allocation6], %s27
      %s30 = sshll.u32 [#allocation5], 4
      %s31 = int_to_ptr.vmem [resolvable:$true] %s30
      %33 = dma.hbm_to_vmem [thread:$0]  %s1, 64, %s31, [#allocation6]
    $region9: #{tpu_custom_call.1} parent=1 // pred_fallthru
      _
    // Predicated region
    $region10: #{tpu_custom_call.1} parent=1 // pred_check
      _
    $region11: #{tpu_custom_call.1} parent=1 // pred_check_branch
      %35 = sbr.rel (0) target = $region13
    $region12: #{tpu_custom_call.1} parent=1 // pred_region
      %s37 = ssub.s32 64, 64
      %38 = vsyncadd [#allocation6], %s37
      %s40 = sshll.u32 [#allocation7], 4
      %s41 = int_to_ptr.vmem [resolvable:$true] %s40
      %43 = dma.hbm_to_vmem [thread:$0]  %s2, 64, %s41, [#allocation6]
    $region13: #{tpu_custom_call.1} parent=1 // pred_fallthru
      _
    // Predicated region
    $region14: #{tpu_custom_call.1} parent=1 // pred_check
      _
    $region15: #{tpu_custom_call.1} parent=1 // pred_check_branch
      %45 = sbr.rel (0) target = $region17
    $region16: #{tpu_custom_call.1} parent=1 // pred_region
      %46 = dma.done [#allocation3], 16
    $region17: #{tpu_custom_call.1} parent=1 // pred_fallthru
      _
    // Predicated region
    $region18: #{tpu_custom_call.1} parent=1 // pred_check
      _
    $region19: #{tpu_custom_call.1} parent=1 // pred_check_branch
      %48 = sbr.rel (0) target = $region21
    $region20: #{tpu_custom_call.1} parent=1 // pred_region
      %49 = dma.done [#allocation6], 64
    $region21: #{tpu_custom_call.1} parent=1 // pred_fallthru
      _
    // Predicated region
    $region22: #{tpu_custom_call.1} parent=1 // pred_check
      _
    $region23: #{tpu_custom_call.1} parent=1 // pred_check_branch
      %51 = sbr.rel (0) target = $region25
    $region24: #{tpu_custom_call.1} parent=1 // pred_region
      %52 = dma.done [#allocation6], 64
    $region25: #{tpu_custom_call.1} parent=1 // pred_fallthru
      _
    %v53 = vld [vmem:[#allocation2] sm:$0x1]
    %v54 = vld [vmem:[#allocation5] sm:$0xf]
    %v56 = vlaneseq
    %v57 = vshrl.u32 %v56, 7
    %v58 = vsub.s32 0, %v57
    %v59 = vrot.slane %v53, %v58
    %v61 = vmul.f32 %v59, %v54
    %vm62 = vcmask 625664
    %63 = vst.msk [vmem:[#allocation8] sm:$0xf] %vm62, %v61
    %v64 = vld [vmem:[#allocation7] sm:$0xf]
    %v65 = vmul.f32 %v59, %v64
    %66 = vst.msk [vmem:[#allocation9] sm:$0xf] %vm62, %v65
    // Predicated region
    $region26: #{tpu_custom_call.1} parent=1 // pred_check
      _
    $region27: #{tpu_custom_call.1} parent=1 // pred_check_branch
      %68 = sbr.rel (0) target = $region29
    $region28: #{tpu_custom_call.1} parent=1 // pred_region
      %s70 = ssub.s32 64, 64
      %71 = vsyncadd [#allocation4], %s70
      %s73 = sshll.u32 [#allocation8], 4
      %s74 = int_to_ptr.vmem [resolvable:$true] %s73
      %76 = dma.vmem_to_hbm [thread:$0]  %s74, 64, %s3, [#allocation4]
    $region29: #{tpu_custom_call.1} parent=1 // pred_fallthru
      _
    // Predicated region
    $region30: #{tpu_custom_call.1} parent=1 // pred_check
      _
    $region31: #{tpu_custom_call.1} parent=1 // pred_check_branch
      %78 = sbr.rel (0) target = $region33
    $region32: #{tpu_custom_call.1} parent=1 // pred_region
      %s80 = ssub.s32 64, 64
      %81 = vsyncadd [#allocation10], %s80
      %s83 = sshll.u32 [#allocation9], 4
      %s84 = int_to_ptr.vmem [resolvable:$true] %s83
      %86 = dma.vmem_to_hbm [thread:$0]  %s84, 64, %s4, [#allocation10]
    $region33: #{tpu_custom_call.1} parent=1 // pred_fallthru
      _
    // Predicated region
    $region34: #{tpu_custom_call.1} parent=1 // pred_check
      _
    $region35: #{tpu_custom_call.1} parent=1 // pred_check_branch
      %88 = sbr.rel (0) target = $region37
    $region36: #{tpu_custom_call.1} parent=1 // pred_region
      %89 = dma.done [#allocation4], 64
    $region37: #{tpu_custom_call.1} parent=1 // pred_fallthru
      _
    // Predicated region
    $region38: #{tpu_custom_call.1} parent=1 // pred_check
      _
    $region39: #{tpu_custom_call.1} parent=1 // pred_check_branch
      %91 = sbr.rel (0) target = $region41
    $region40: #{tpu_custom_call.1} parent=1 // pred_region
      %92 = dma.done [#allocation10], 64
    $region41: #{tpu_custom_call.1} parent=1 // pred_fallthru
      _
    %93 = vsyncpa [#allocation3], 1
    %94 = vsyncpa [#allocation6], 1
    %95 = vsyncpa [#allocation4], 1
    %96 = vsyncpa [#allocation10], 1

</llo_original>
